<compile_context>
chip_gen: v6e
topology: v6e:2x2x1
jax: 0.10.0
libtpu: 0.0.40
codegen_flags: <defaults>
</compile_context>

<pallas_src>
import functools

import jax
import jax.numpy as jnp
from jax.experimental import pallas as pl
from jax.experimental.pallas import tpu as pltpu

HIDDEN = 256
MSG_DIM = 8
TARG_DIM = 3
HEAD_PAD = 128  # fused head output width (lane-dense)


def _actor_kernel(state_ref, leg_ref, w1_ref, w2_ref, wh_ref, b_ref, out_ref,
                  *, action_dim):
    # Hidden layer 1: relu(state @ W1 + b1). Weights are bf16; activations are
    # cast to bf16 only at the MXU operands, accumulation is f32.
    x = state_ref[...].astype(jnp.bfloat16)
    a = jnp.dot(x, w1_ref[...], preferred_element_type=jnp.float32)
    a = jnp.maximum(a + b_ref[0:1, :], 0.0)

    # Hidden layer 2: relu(a @ W2 + b2).
    a = jnp.dot(a.astype(jnp.bfloat16), w2_ref[...],
                preferred_element_type=jnp.float32)
    a = jnp.maximum(a + b_ref[1:2, :], 0.0)

    # Fused heads: one [HIDDEN, 128] matmul producing [pi|stdv|msg|targ|pad].
    heads = jnp.dot(a.astype(jnp.bfloat16), wh_ref[...],
                    preferred_element_type=jnp.float32)
    heads = heads + b_ref[2:3, :HEAD_PAD]

    # Sigmoid only on the msg/targ columns; legality multiplier was pre-padded
    # lane-dense (ones outside the msg columns). exp + approx reciprocal both
    # run on the EUP slot.
    lane = jax.lax.broadcasted_iota(jnp.int32, heads.shape, 1)
    sig_lo = 2 * action_dim
    sig_hi = sig_lo + MSG_DIM + TARG_DIM
    sig_mask = (lane >= sig_lo) & (lane < sig_hi)
    sig = pl.reciprocal(1.0 + jnp.exp(-heads), approx=True)
    out_ref[...] = jnp.where(sig_mask, sig, heads) * leg_ref[...]


def make_actor_forward(batch, state_dim, action_dim, block_m=128):
    assert 2 * action_dim + MSG_DIM + TARG_DIM <= HEAD_PAD

    n_tiles = pl.cdiv(batch, block_m)
    padded_batch = n_tiles * block_m
    pad_rows = padded_batch - batch
    sig_lo = 2 * action_dim

    kernel = functools.partial(_actor_kernel, action_dim=action_dim)

    grid_spec = pltpu.PrefetchScalarGridSpec(
        num_scalar_prefetch=0,
        grid=(n_tiles,),
        in_specs=[
            # Streamed per batch tile.
            pl.BlockSpec((block_m, state_dim), lambda i: (i, 0)),
            pl.BlockSpec((block_m, HEAD_PAD), lambda i: (i, 0)),
            # VMEM-resident across the whole grid (constant block index).
            pl.BlockSpec((state_dim, HIDDEN), lambda i: (0, 0)),
            pl.BlockSpec((HIDDEN, HIDDEN), lambda i: (0, 0)),
            pl.BlockSpec((HIDDEN, HEAD_PAD), lambda i: (0, 0)),
            pl.BlockSpec((3, HIDDEN), lambda i: (0, 0)),
        ],
        out_specs=pl.BlockSpec((block_m, HEAD_PAD), lambda i: (i, 0)),
    )

    weight_bytes = (state_dim * HIDDEN + HIDDEN * HIDDEN + HIDDEN * HEAD_PAD) * 2
    cost = pl.CostEstimate(
        flops=2 * padded_batch * (state_dim * HIDDEN + HIDDEN * HIDDEN
                                  + HIDDEN * HEAD_PAD),
        transcendentals=padded_batch * HEAD_PAD,
        bytes_accessed=(padded_batch * state_dim * 4          # state in
                        + 2 * padded_batch * HEAD_PAD * 4     # legality + out
                        + weight_bytes + 3 * HIDDEN * 4),     # weights + biases
    )

    call = pl.pallas_call(
        kernel,
        out_shape=jax.ShapeDtypeStruct((padded_batch, HEAD_PAD), jnp.float32),
        grid_spec=grid_spec,
        compiler_params=pltpu.CompilerParams(
            dimension_semantics=("parallel",),
            vmem_limit_bytes=32 << 20,
        ),
        cost_estimate=cost,
    )

    def forward(state, legality, params):
        w1, w2, wh, b_all = params
        # Lane-dense legality multiplier in a single pad op: legality at the
        # msg columns, ones everywhere else (and on any padded rows).
        leg_full = jnp.pad(
            legality,
            ((0, pad_rows), (sig_lo, HEAD_PAD - sig_lo - MSG_DIM)),
            constant_values=1.0)
        state_p = jnp.pad(state, ((0, pad_rows), (0, 0))) if pad_rows else state

        out = call(state_p, leg_full, w1, w2, wh, b_all)
        out = out[:batch] if pad_rows else out

        pi = out[:, 0:action_dim]
        stdv = out[:, action_dim:2 * action_dim]
        msg = out[:, sig_lo:sig_lo + MSG_DIM]
        targ = out[:, sig_lo + MSG_DIM:sig_lo + MSG_DIM + TARG_DIM]
        return pi, stdv, msg, targ

    return jax.jit(forward)


def _init_linear(key, fan_in, fan_out):
    # Mimics PyTorch's default uniform(-1/sqrt(fan_in), 1/sqrt(fan_in)).
    kw, kb = jax.random.split(key)
    bound = 1.0 / jnp.sqrt(jnp.float32(fan_in))
    w = jax.random.uniform(kw, (fan_in, fan_out), jnp.float32, -bound, bound)
    b = jax.random.uniform(kb, (fan_out,), jnp.float32, -bound, bound)
    return w, b


def init_actor_params(key, state_dim, action_dim):
    keys = jax.random.split(key, 6)
    w1, b1 = _init_linear(keys[0], state_dim, HIDDEN)    # l1
    w2, b2 = _init_linear(keys[1], HIDDEN, HIDDEN)       # l2
    w3, b3 = _init_linear(keys[2], HIDDEN, action_dim)   # l3 (pi)
    w4, b4 = _init_linear(keys[3], HIDDEN, action_dim)   # l4 (stdv)
    wm, bm = _init_linear(keys[4], HIDDEN, MSG_DIM)      # msg
    wt, bt = _init_linear(keys[5], HIDDEN, TARG_DIM)     # targ

    # Fuse head weights: [HIDDEN, pi|stdv|msg|targ] zero-padded to [HIDDEN,128].
    head_w = jnp.concatenate([w3, w4, wm, wt], axis=1)
    pad = HEAD_PAD - head_w.shape[1]
    head_w = jnp.pad(head_w, ((0, 0), (0, pad)))
    head_b = jnp.pad(jnp.concatenate([b3, b4, bm, bt]), (0, pad))

    # Pack all biases into one [3, HIDDEN] f32 operand (row 2's first 128
    # lanes hold the fused head biases).
    b_all = jnp.stack([b1, b2, jnp.pad(head_b, (0, HIDDEN - HEAD_PAD))])

    # Weights live in bf16; biases stay f32.
    return (w1.astype(jnp.bfloat16), w2.astype(jnp.bfloat16),
            head_w.astype(jnp.bfloat16), b_all)


def reference_forward(state, legality, params, action_dim):
    # Pure-JAX f32 reference of the module's math (weights upcast from bf16).
    w1, w2, wh, b_all = params
    w1 = w1.astype(jnp.float32)
    w2 = w2.astype(jnp.float32)
    wh = wh.astype(jnp.float32)
    b1, b2, bh = b_all[0], b_all[1], b_all[2, :HEAD_PAD]
    a = jnp.maximum(state @ w1 + b1, 0.0)
    a = jnp.maximum(a @ w2 + b2, 0.0)
    heads = a @ wh + bh
    lo = 2 * action_dim
    pi = heads[:, 0:action_dim]
    stdv = heads[:, action_dim:2 * action_dim]
    msg = jax.nn.sigmoid(heads[:, lo:lo + MSG_DIM]) * legality
    targ = jax.nn.sigmoid(heads[:, lo + MSG_DIM:lo + MSG_DIM + TARG_DIM])
    return pi, stdv, msg, targ


if __name__ == "__main__":
    batch = 256          # multiple batch tiles -> weights amortized over grid
    state_dim = 32
    action_dim = 4
    block_m = 128

    key = jax.random.PRNGKey(0)
    k_state, k_leg, k_params = jax.random.split(key, 3)

    state = jax.random.normal(k_state, (batch, state_dim), jnp.float32)
    # legality mask in {0, 1}, same shape as the msg head output
    legality = (jax.random.uniform(k_leg, (batch, MSG_DIM)) > 0.5).astype(jnp.float32)

    params = init_actor_params(k_params, state_dim, action_dim)

    forward = make_actor_forward(batch, state_dim, action_dim, block_m=block_m)
    pi, stdv, msg, targ = forward(state, legality, params)
    jax.block_until_ready((pi, stdv, msg, targ))

    # Sanity-check against a pure-JAX f32 reference (bf16 weight storage and
    # approx reciprocal in the kernel path -> loose-ish tolerance).
    ref = reference_forward(state, legality, params, action_dim)
    for got, want in zip((pi, stdv, msg, targ), ref):
        assert got.shape == want.shape and got.dtype == want.dtype
        assert jnp.allclose(got, want, atol=2e-2, rtol=2e-2)

    print("KERNEL_OK")
</pallas_src>

<mosaic_0001>
module attributes {stable_mosaic.version = 11 : i64} {
  func.func @_actor_kernel(%arg0: i32, %arg1: memref<128x32xf32, #tpu.memory_space<vmem>>, %arg2: memref<128x128xf32, #tpu.memory_space<vmem>>, %arg3: memref<32x256xbf16, #tpu.memory_space<vmem>>, %arg4: memref<256x256xbf16, #tpu.memory_space<vmem>>, %arg5: memref<256x128xbf16, #tpu.memory_space<vmem>>, %arg6: memref<3x256xf32, #tpu.memory_space<vmem>>, %arg7: memref<128x128xf32, #tpu.memory_space<vmem>>) attributes {dimension_semantics = [#tpu.dimension_semantics<parallel>], iteration_bounds = array<i64: 2>, scalar_prefetch = 0 : i64, scratch_operands = 0 : i64, tpu.core_type = #tpu.core_type<tc>, window_params = [{transform_indices = @transform_0, window_bounds = array<i64: 128, 32>}, {transform_indices = @transform_1, window_bounds = array<i64: 128, 128>}, {pipeline_mode = #tpu.pipeline_mode<synchronous>, transform_indices = @transform_2, window_bounds = array<i64: 32, 256>}, {pipeline_mode = #tpu.pipeline_mode<synchronous>, transform_indices = @transform_3, window_bounds = array<i64: 256, 256>}, {pipeline_mode = #tpu.pipeline_mode<synchronous>, transform_indices = @transform_4, window_bounds = array<i64: 256, 128>}, {pipeline_mode = #tpu.pipeline_mode<synchronous>, transform_indices = @transform_5, window_bounds = array<i64: 3, 256>}, {transform_indices = @transform_6, window_bounds = array<i64: 128, 128>}]} {
    %c0 = arith.constant 0 : index
    %c0_0 = arith.constant 0 : index
    %0 = vector.load %arg1[%c0, %c0_0] : memref<128x32xf32, #tpu.memory_space<vmem>>, vector<128x32xf32>
    %1 = arith.truncf %0 : vector<128x32xf32> to vector<128x32xbf16>
    %c0_1 = arith.constant 0 : index
    %c0_2 = arith.constant 0 : index
    %2 = vector.load %arg3[%c0_1, %c0_2] : memref<32x256xbf16, #tpu.memory_space<vmem>>, vector<32x256xbf16>
    %cst = arith.constant dense<0.000000e+00> : vector<128x256xf32>
    %3 = tpu.matmul %1, %2, %cst {dimension_numbers = #tpu.dot_dimension_numbers<[1], [0], [0], [1], [0, 0, 1, 1], [], []>} : vector<128x32xbf16>, vector<32x256xbf16>, vector<128x256xf32> -> vector<128x256xf32>
    %c0_3 = arith.constant 0 : index
    %c0_4 = arith.constant 0 : index
    %4 = vector.load %arg6[%c0_3, %c0_4] : memref<3x256xf32, #tpu.memory_space<vmem>>, vector<1x256xf32>
    %5 = vector.broadcast %4 : vector<1x256xf32> to vector<128x256xf32>
    %6 = arith.addf %3, %5 : vector<128x256xf32>
    %cst_5 = arith.constant 0.000000e+00 : f32
    %7 = vector.broadcast %cst_5 : f32 to vector<128x256xf32>
    %8 = arith.maximumf %6, %7 : vector<128x256xf32>
    %9 = arith.truncf %8 : vector<128x256xf32> to vector<128x256xbf16>
    %c0_6 = arith.constant 0 : index
    %c0_7 = arith.constant 0 : index
    %10 = vector.load %arg4[%c0_6, %c0_7] : memref<256x256xbf16, #tpu.memory_space<vmem>>, vector<256x256xbf16>
    %cst_8 = arith.constant dense<0.000000e+00> : vector<128x256xf32>
    %11 = tpu.matmul %9, %10, %cst_8 {dimension_numbers = #tpu.dot_dimension_numbers<[1], [0], [0], [1], [0, 0, 1, 1], [], []>} : vector<128x256xbf16>, vector<256x256xbf16>, vector<128x256xf32> -> vector<128x256xf32>
    %c1 = arith.constant 1 : index
    %c0_9 = arith.constant 0 : index
    %12 = vector.load %arg6[%c1, %c0_9] : memref<3x256xf32, #tpu.memory_space<vmem>>, vector<1x256xf32>
    %13 = vector.broadcast %12 : vector<1x256xf32> to vector<128x256xf32>
    %14 = arith.addf %11, %13 : vector<128x256xf32>
    %cst_10 = arith.constant 0.000000e+00 : f32
    %15 = vector.broadcast %cst_10 : f32 to vector<128x256xf32>
    %16 = arith.maximumf %14, %15 : vector<128x256xf32>
    %17 = arith.truncf %16 : vector<128x256xf32> to vector<128x256xbf16>
    %c0_11 = arith.constant 0 : index
    %c0_12 = arith.constant 0 : index
    %18 = vector.load %arg5[%c0_11, %c0_12] : memref<256x128xbf16, #tpu.memory_space<vmem>>, vector<256x128xbf16>
    %cst_13 = arith.constant dense<0.000000e+00> : vector<128x128xf32>
    %19 = tpu.matmul %17, %18, %cst_13 {dimension_numbers = #tpu.dot_dimension_numbers<[1], [0], [0], [1], [0, 0, 1, 1], [], []>} : vector<128x256xbf16>, vector<256x128xbf16>, vector<128x128xf32> -> vector<128x128xf32>
    %c2 = arith.constant 2 : index
    %c0_14 = arith.constant 0 : index
    %20 = vector.load %arg6[%c2, %c0_14] : memref<3x256xf32, #tpu.memory_space<vmem>>, vector<1x128xf32>
    %21 = vector.broadcast %20 : vector<1x128xf32> to vector<128x128xf32>
    %22 = arith.addf %19, %21 : vector<128x128xf32>
    %23 = tpu.iota {dimensions = array<i32: 1>} : vector<128x128xi32>
    %c8_i32 = arith.constant 8 : i32
    %24 = vector.broadcast %c8_i32 : i32 to vector<128x128xi32>
    %25 = arith.cmpi sge, %23, %24 : vector<128x128xi32>
    %c19_i32 = arith.constant 19 : i32
    %26 = vector.broadcast %c19_i32 : i32 to vector<128x128xi32>
    %27 = arith.cmpi slt, %23, %26 : vector<128x128xi32>
    %28 = arith.andi %25, %27 : vector<128x128xi1>
    %cst_15 = arith.constant 0.000000e+00 : f32
    %29 = vector.broadcast %cst_15 : f32 to vector<128x128xf32>
    %30 = arith.subf %29, %22 : vector<128x128xf32>
    %31 = math.exp %30 : vector<128x128xf32>
    %cst_16 = arith.constant 1.000000e+00 : f32
    %32 = vector.broadcast %cst_16 : f32 to vector<128x128xf32>
    %33 = arith.addf %32, %31 : vector<128x128xf32>
    %34 = tpu.reciprocal %33 {approx = true} : vector<128x128xf32> -> vector<128x128xf32>
    %35 = arith.select %28, %34, %22 : vector<128x128xi1>, vector<128x128xf32>
    %c0_17 = arith.constant 0 : index
    %c0_18 = arith.constant 0 : index
    %36 = vector.load %arg2[%c0_17, %c0_18] : memref<128x128xf32, #tpu.memory_space<vmem>>, vector<128x128xf32>
    %37 = arith.mulf %35, %36 : vector<128x128xf32>
    %c0_19 = arith.constant 0 : index
    %c0_20 = arith.constant 0 : index
    %38 = vector.load %arg7[%c0_19, %c0_20] : memref<128x128xf32, #tpu.memory_space<vmem>>, vector<128x128xf32>
    tpu.vector_store %arg7[%c0_19, %c0_20], %37 {strides = array<i32>} : memref<128x128xf32, #tpu.memory_space<vmem>>, vector<128x128xf32>,
    return
  }
  func.func @transform_0(%arg0: i32) -> (i32, i32) {
    %c0_i32 = arith.constant 0 : i32
    %c0_i32_0 = arith.constant 0 : i32
    return %arg0, %c0_i32 : i32, i32
  }
  func.func @transform_1(%arg0: i32) -> (i32, i32) {
    %c0_i32 = arith.constant 0 : i32
    %c0_i32_0 = arith.constant 0 : i32
    return %arg0, %c0_i32 : i32, i32
  }
  func.func @transform_2(%arg0: i32) -> (i32, i32) {
    %c0_i32 = arith.constant 0 : i32
    %c0_i32_0 = arith.constant 0 : i32
    %c0_i32_1 = arith.constant 0 : i32
    return %c0_i32, %c0_i32_0 : i32, i32
  }
  func.func @transform_3(%arg0: i32) -> (i32, i32) {
    %c0_i32 = arith.constant 0 : i32
    %c0_i32_0 = arith.constant 0 : i32
    %c0_i32_1 = arith.constant 0 : i32
    return %c0_i32, %c0_i32_0 : i32, i32
  }
  func.func @transform_4(%arg0: i32) -> (i32, i32) {
    %c0_i32 = arith.constant 0 : i32
    %c0_i32_0 = arith.constant 0 : i32
    %c0_i32_1 = arith.constant 0 : i32
    return %c0_i32, %c0_i32_0 : i32, i32
  }
  func.func @transform_5(%arg0: i32) -> (i32, i32) {
    %c0_i32 = arith.constant 0 : i32
    %c0_i32_0 = arith.constant 0 : i32
    %c0_i32_1 = arith.constant 0 : i32
    return %c0_i32, %c0_i32_0 : i32, i32
  }
  func.func @transform_6(%arg0: i32) -> (i32, i32) {
    %c0_i32 = arith.constant 0 : i32
    %c0_i32_0 = arith.constant 0 : i32
    return %arg0, %c0_i32 : i32, i32
  }
}

</mosaic_0001>

<llo_original>
// kernel: forward.1
$region0: #{forward.1}
  #allocation0 [shape = 'u32[]', space=smem, size = 0x4, offset = 0x4, fixed_abs, tag = 'smem constant byte address 0x4 - core index']
  #allocation1 [shape = 'u32[144,128]{1,0:T(1,128)}', space=vmem, size = 0x12000, scoped, tag = 'internal scratch']
  %s0 = inlined_call_operand.vmem [shape: f32[256,32], index: 0, kind: input, shape index: {}]
  %s1 = inlined_call_operand.vmem [shape: f32[256,128], index: 1, kind: input, shape index: {}]
  %s2 = inlined_call_operand.vmem [shape: bf16[32,256], index: 2, kind: input, shape index: {}]
  %s3 = inlined_call_operand.vmem [shape: bf16[256,256], index: 3, kind: input, shape index: {}]
  %s4 = inlined_call_operand.vmem [shape: bf16[256,128], index: 4, kind: input, shape index: {}]
  %s5 = inlined_call_operand.vmem [shape: f32[3,256], index: 5, kind: input, shape index: {}]
  %s6 = inlined_call_operand.vmem [shape: f32[256,128], index: 6, kind: output, shape index: {}]
  %s7 = sld [smem:[#allocation0]]
  $region57: #{forward.1} parent=0
    _
  %s9 = ssub.s32 1, %s7
  %s10 = scalar_select 0, %s9, %s7
  loop: start=0, step=1, limit=4
  $region2: #{forward.1} parent=0 // loop_pre_header
    _
  $region3: #{forward.1} parent=0 // loop_header
    %s12 = sphi 0, %s16
    %p13 = scmp.ge.s32.totalorder %s12, 4
    %s22 = sphi 0, %s24
    %s25 = sphi 0, %s22
    %s26 = sphi 0, %s25
    %s42 = sphi 0, %s26
    %s48 = sphi 0, %s50
    %s51 = sphi 0, %s48
    %s52 = sphi 0, %s51
    %s68 = sphi 0, %s52
    %s72 = sphi 0, %s72
    %s74 = sphi 0, %s72
    %s75 = sphi 0, %s74
    %s89 = sphi 0, %s75
    %s93 = sphi 0, %s93
    %s95 = sphi 0, %s93
    %s96 = sphi 0, %s95
    %s110 = sphi 0, %s96
    %s114 = sphi 0, %s114
    %s116 = sphi 0, %s114
    %s117 = sphi 0, %s116
    %s131 = sphi 0, %s117
    %s135 = sphi 0, %s135
    %s137 = sphi 0, %s135
    %s138 = sphi 0, %s137
    %s152 = sphi 0, %s138
    %s158 = sphi 0, %s160
    %s161 = sphi 0, %s158
    %s162 = sphi 0, %s161
    %s178 = sphi 0, %s162
  $region4: #{forward.1} parent=0 // loop_header_branch
    %15 = sbr.rel (%p13) target = $region8
  $region5: #{forward.1} parent=0 // loop_body
    %s17 = ssub.s32 %s12, 1
    %s18 = ssub.s32 %s12, 2
    %s19 = sadd.s32 %s12, 1
    %s20 = ssub.s32 %s12, %s19
    %p21 = scmp.eq.s32.totalorder %s20, 0
    %s23 = sadd.s32 %s22, 1
    %s24 = scalar_select %p21, %s22, %s23
    %p27 = pneg %p21
    %p28 = scmp.eq.s32.totalorder %s12, 1
    %p29 = por %p27, %p28
    %p30 = scmp.ne.s32.totalorder %s22, %s25
    %p31 = scmp.eq.s32.totalorder %s12, 0
    %p32 = por %p30, %p31
    %p33 = scmp.ne.s32.totalorder %s22, %s25
    %p34 = scmp.eq.s32.totalorder %s17, 1
    %p35 = por %p33, %p34
    %p36 = scmp.ne.s32.totalorder %s25, %s26
    %p37 = scmp.eq.s32.totalorder %s17, 0
    %p38 = por %p36, %p37
    %p39 = scmp.ne.s32.totalorder %s25, %s26
    %p40 = scmp.eq.s32.totalorder %s18, 1
    %p41 = por %p39, %p40
    %p43 = scmp.ne.s32.totalorder %s26, %s42
    %p44 = scmp.eq.s32.totalorder %s18, 0
    %p45 = por %p43, %p44
    %s46 = ssub.s32 %s12, %s19
    %p47 = scmp.eq.s32.totalorder %s46, 0
    %s49 = sadd.s32 %s48, 1
    %s50 = scalar_select %p47, %s48, %s49
    %p53 = pneg %p47
    %p54 = scmp.eq.s32.totalorder %s12, 1
    %p55 = por %p53, %p54
    %p56 = scmp.ne.s32.totalorder %s48, %s51
    %p57 = scmp.eq.s32.totalorder %s12, 0
    %p58 = por %p56, %p57
    %p59 = scmp.ne.s32.totalorder %s48, %s51
    %p60 = scmp.eq.s32.totalorder %s17, 1
    %p61 = por %p59, %p60
    %p62 = scmp.ne.s32.totalorder %s51, %s52
    %p63 = scmp.eq.s32.totalorder %s17, 0
    %p64 = por %p62, %p63
    %p65 = scmp.ne.s32.totalorder %s51, %s52
    %p66 = scmp.eq.s32.totalorder %s18, 1
    %p67 = por %p65, %p66
    %p69 = scmp.ne.s32.totalorder %s52, %s68
    %p70 = scmp.eq.s32.totalorder %s18, 0
    %p71 = por %p69, %p70
    %s73 = sadd.s32 %s72, 1
    %p76 = scmp.eq.s32.totalorder %s12, 1
    %p77 = scmp.ne.s32.totalorder %s72, %s74
    %p78 = scmp.eq.s32.totalorder %s12, 0
    %p79 = por %p77, %p78
    %p80 = scmp.ne.s32.totalorder %s72, %s74
    %p81 = scmp.eq.s32.totalorder %s17, 1
    %p82 = por %p80, %p81
    %p83 = scmp.ne.s32.totalorder %s74, %s75
    %p84 = scmp.eq.s32.totalorder %s17, 0
    %p85 = por %p83, %p84
    %p86 = scmp.ne.s32.totalorder %s74, %s75
    %p87 = scmp.eq.s32.totalorder %s18, 1
    %p88 = por %p86, %p87
    %p90 = scmp.ne.s32.totalorder %s75, %s89
    %p91 = scmp.eq.s32.totalorder %s18, 0
    %p92 = por %p90, %p91
    %s94 = sadd.s32 %s93, 1
    %p97 = scmp.eq.s32.totalorder %s12, 1
    %p98 = scmp.ne.s32.totalorder %s93, %s95
    %p99 = scmp.eq.s32.totalorder %s12, 0
    %p100 = por %p98, %p99
    %p101 = scmp.ne.s32.totalorder %s93, %s95
    %p102 = scmp.eq.s32.totalorder %s17, 1
    %p103 = por %p101, %p102
    %p104 = scmp.ne.s32.totalorder %s95, %s96
    %p105 = scmp.eq.s32.totalorder %s17, 0
    %p106 = por %p104, %p105
    %p107 = scmp.ne.s32.totalorder %s95, %s96
    %p108 = scmp.eq.s32.totalorder %s18, 1
    %p109 = por %p107, %p108
    %p111 = scmp.ne.s32.totalorder %s96, %s110
    %p112 = scmp.eq.s32.totalorder %s18, 0
    %p113 = por %p111, %p112
    %s115 = sadd.s32 %s114, 1
    %p118 = scmp.eq.s32.totalorder %s12, 1
    %p119 = scmp.ne.s32.totalorder %s114, %s116
    %p120 = scmp.eq.s32.totalorder %s12, 0
    %p121 = por %p119, %p120
    %p122 = scmp.ne.s32.totalorder %s114, %s116
    %p123 = scmp.eq.s32.totalorder %s17, 1
    %p124 = por %p122, %p123
    %p125 = scmp.ne.s32.totalorder %s116, %s117
    %p126 = scmp.eq.s32.totalorder %s17, 0
    %p127 = por %p125, %p126
    %p128 = scmp.ne.s32.totalorder %s116, %s117
    %p129 = scmp.eq.s32.totalorder %s18, 1
    %p130 = por %p128, %p129
    %p132 = scmp.ne.s32.totalorder %s117, %s131
    %p133 = scmp.eq.s32.totalorder %s18, 0
    %p134 = por %p132, %p133
    %s136 = sadd.s32 %s135, 1
    %p139 = scmp.eq.s32.totalorder %s12, 1
    %p140 = scmp.ne.s32.totalorder %s135, %s137
    %p141 = scmp.eq.s32.totalorder %s12, 0
    %p142 = por %p140, %p141
    %p143 = scmp.ne.s32.totalorder %s135, %s137
    %p144 = scmp.eq.s32.totalorder %s17, 1
    %p145 = por %p143, %p144
    %p146 = scmp.ne.s32.totalorder %s137, %s138
    %p147 = scmp.eq.s32.totalorder %s17, 0
    %p148 = por %p146, %p147
    %p149 = scmp.ne.s32.totalorder %s137, %s138
    %p150 = scmp.eq.s32.totalorder %s18, 1
    %p151 = por %p149, %p150
    %p153 = scmp.ne.s32.totalorder %s138, %s152
    %p154 = scmp.eq.s32.totalorder %s18, 0
    %p155 = por %p153, %p154
    %s156 = ssub.s32 %s12, %s19
    %p157 = scmp.eq.s32.totalorder %s156, 0
    %s159 = sadd.s32 %s158, 1
    %s160 = scalar_select %p157, %s158, %s159
    %p163 = pneg %p157
    %p164 = scmp.eq.s32.totalorder %s12, 1
    %p165 = por %p163, %p164
    %p166 = scmp.ne.s32.totalorder %s158, %s161
    %p167 = scmp.eq.s32.totalorder %s12, 0
    %p168 = por %p166, %p167
    %p169 = scmp.ne.s32.totalorder %s158, %s161
    %p170 = scmp.eq.s32.totalorder %s17, 1
    %p171 = por %p169, %p170
    %p172 = scmp.ne.s32.totalorder %s161, %s162
    %p173 = scmp.eq.s32.totalorder %s17, 0
    %p174 = por %p172, %p173
    %p175 = scmp.ne.s32.totalorder %s161, %s162
    %p176 = scmp.eq.s32.totalorder %s18, 1
    %p177 = por %p175, %p176
    %p179 = scmp.ne.s32.totalorder %s162, %s178
    %p180 = scmp.eq.s32.totalorder %s18, 0
    %p181 = por %p179, %p180
    %p182 = scmp.le.s32.totalorder 1, %s12
    %p183 = scmp.lt.s32.totalorder %s12, 3
    %p184 = pnand %p182, %p183
    %p185 = pneg %p184
    // Predicated region
    $region9: #{forward.1} parent=5 // pred_check
      _
    $region10: #{forward.1} parent=5 // pred_check_branch
      %187 = sbr.rel (%p184) target = $region12
    $region11: #{forward.1} parent=5 // pred_region
      %s188 = ssub.s32 %s12, 1
      // Predicated region
      $region13: #{forward.1} parent=11 // pred_check
        %p189 = pneg %p85
      $region14: #{forward.1} parent=11 // pred_check_branch
        %191 = sbr.rel (%p189) target = $region16
      $region15: #{forward.1} parent=11 // pred_region
        _
      $region16: #{forward.1} parent=11 // pred_fallthru
        _
      // Predicated region
      $region17: #{forward.1} parent=11 // pred_check
        %p192 = pneg %p106
      $region18: #{forward.1} parent=11 // pred_check_branch
        %194 = sbr.rel (%p192) target = $region20
      $region19: #{forward.1} parent=11 // pred_region
        _
      $region20: #{forward.1} parent=11 // pred_fallthru
        _
      // Predicated region
      $region21: #{forward.1} parent=11 // pred_check
        %p195 = pneg %p127
      $region22: #{forward.1} parent=11 // pred_check_branch
        %197 = sbr.rel (%p195) target = $region24
      $region23: #{forward.1} parent=11 // pred_region
        _
      $region24: #{forward.1} parent=11 // pred_fallthru
        _
      // Predicated region
      $region25: #{forward.1} parent=11 // pred_check
        %p198 = pneg %p148
      $region26: #{forward.1} parent=11 // pred_check_branch
        %200 = sbr.rel (%p198) target = $region28
      $region27: #{forward.1} parent=11 // pred_region
        _
      $region28: #{forward.1} parent=11 // pred_fallthru
        _
    $region12: #{forward.1} parent=5 // pred_fallthru
      _
    %p201 = scmp.lt.s32.totalorder %s12, 2
    // Predicated region
    $region29: #{forward.1} parent=5 // pred_check
      %p202 = pneg %p201
    $region30: #{forward.1} parent=5 // pred_check_branch
      %204 = sbr.rel (%p202) target = $region32
    $region31: #{forward.1} parent=5 // pred_region
      // Predicated region
      $region33: #{forward.1} parent=31 // pred_check
        %p205 = pneg %p32
      $region34: #{forward.1} parent=31 // pred_check_branch
        %207 = sbr.rel (%p205) target = $region36
      $region35: #{forward.1} parent=31 // pred_region
        %s208 = smul.u32 16, %s12
        %p209 = scmp.lt.s32.totalorder %s208, 31
        %s210 = scalar_select %p209, %s208, 31
        %s211 = smul.addr %s210, 8
        %s212 = scalar_lea.vmem %s0, %s211
        %s213 = smul.u32 16, %s12
      $region36: #{forward.1} parent=31 // pred_fallthru
        _
      // Predicated region
      $region37: #{forward.1} parent=31 // pred_check
        %p214 = pneg %p58
      $region38: #{forward.1} parent=31 // pred_check_branch
        %216 = sbr.rel (%p214) target = $region40
      $region39: #{forward.1} parent=31 // pred_region
        %s217 = smul.u32 16, %s12
        %p218 = scmp.lt.s32.totalorder %s217, 31
        %s219 = scalar_select %p218, %s217, 31
        %s220 = smul.addr %s219, 8
        %s221 = scalar_lea.vmem %s1, %s220
        %s222 = smul.u32 16, %s12
      $region40: #{forward.1} parent=31 // pred_fallthru
        _
    $region32: #{forward.1} parent=5 // pred_fallthru
      _
    %p223 = scmp.le.s32.totalorder 1, %s12
    %p224 = scmp.lt.s32.totalorder %s12, 3
    %p225 = pnand %p223, %p224
    %p226 = pneg %p225
    // Predicated region
    $region41: #{forward.1} parent=5 // pred_check
      _
    $region42: #{forward.1} parent=5 // pred_check_branch
      %228 = sbr.rel (%p225) target = $region44
    $region43: #{forward.1} parent=5 // pred_region
      %s229 = ssub.s32 %s12, 1
      %s230 = smul.u32 16, %s17
      %p231 = scmp.lt.s32.totalorder %s230, 31
      %s232 = scalar_select %p231, %s230, 31
      %s233 = smul.addr %s232, 8
      %s234 = scalar_lea.vmem %s0, %s233
      %p235 = pneg %p38
      %p236 = pneg %p35
      %s237 = smul.u32 16, %s17
      %p238 = scmp.lt.s32.totalorder %s237, 31
      %s239 = scalar_select %p238, %s237, 31
      %s240 = smul.addr %s239, 8
      %s241 = scalar_lea.vmem %s1, %s240
      %p242 = pneg %p64
      %p243 = pneg %p61
      %p244 = pneg %p85
      %p245 = pneg %p82
      %p246 = pneg %p106
      %p247 = pneg %p103
      %p248 = pneg %p127
      %p249 = pneg %p124
      %p250 = pneg %p148
      %p251 = pneg %p145
      %p252 = pneg %p174
      %p253 = pneg %p171
      %s254 = smul.u32 16, %s17
      %p255 = scmp.lt.s32.totalorder %s254, 31
      %s256 = scalar_select %p255, %s254, 31
      %s257 = smul.addr %s256, 8
      %s258 = scalar_lea.vmem %s6, %s257
      %s259 = smul.u32 16, %s17
      %p260 = scmp.lt.s32.totalorder %s259, 31
      %s261 = scalar_select %p260, %s259, 31
      %s262 = smul.addr %s261, 8
      %s263 = scalar_lea.vmem %s0, %s262
      %s264 = smul.u32 16, %s17
      %s265 = smul.u32 16, %s17
      %p266 = scmp.lt.s32.totalorder %s265, 31
      %s267 = scalar_select %p266, %s265, 31
      %s268 = smul.addr %s267, 8
      %s269 = scalar_lea.vmem %s1, %s268
      %s270 = smul.u32 16, %s17
      %s271 = smul.u32 16, %s17
      %p272 = scmp.lt.s32.totalorder %s271, 31
      %s273 = scalar_select %p272, %s271, 31
      %s274 = smul.addr %s273, 8
      %s275 = scalar_lea.vmem %s6, %s274
      %s276 = smul.u32 16, %s17
      %v278 = vld [vmem:[%s263] sm:$0xff]
      %v279 = vld [vmem:[%s263 + $0x8] sm:$0xff]
      %v280 = vld [vmem:[%s263 + $0x10] sm:$0xff]
      %v281 = vld [vmem:[%s263 + $0x18] sm:$0xff]
      %v282 = vld [vmem:[%s263 + $0x20] sm:$0xff]
      %v283 = vld [vmem:[%s263 + $0x28] sm:$0xff]
      %v284 = vld [vmem:[%s263 + $0x30] sm:$0xff]
      %v285 = vld [vmem:[%s263 + $0x38] sm:$0xff]
      %v286 = vld [vmem:[%s263 + $0x40] sm:$0xff]
      %v287 = vld [vmem:[%s263 + $0x48] sm:$0xff]
      %v288 = vld [vmem:[%s263 + $0x50] sm:$0xff]
      %v289 = vld [vmem:[%s263 + $0x58] sm:$0xff]
      %v290 = vld [vmem:[%s263 + $0x60] sm:$0xff]
      %v291 = vld [vmem:[%s263 + $0x68] sm:$0xff]
      %v292 = vld [vmem:[%s263 + $0x70] sm:$0xff]
      %v293 = vld [vmem:[%s263 + $0x78] sm:$0xff]
      %v294 = vpack.c.bf16 %v279, %v278
      %v295 = vpack.c.bf16 %v281, %v280
      %v296 = vpack.c.bf16 %v283, %v282
      %v297 = vpack.c.bf16 %v285, %v284
      %v298 = vpack.c.bf16 %v287, %v286
      %v299 = vpack.c.bf16 %v289, %v288
      %v300 = vpack.c.bf16 %v291, %v290
      %v301 = vpack.c.bf16 %v293, %v292
      %v302 = vld [vmem:[%s2] sm:$0xff]
      %v303 = vld [vmem:[%s2 + $0x8] sm:$0xff]
      %v304 = vld [vmem:[%s2 + $0x10] sm:$0xff]
      %v305 = vld [vmem:[%s2 + $0x18] sm:$0xff]
      %v306 = vld [vmem:[%s5] ss:$4 sm:$0x3]
      %v308 = vlaneseq
      %v309 = vshrl.u32 %v308, 7
      %v310 = vsub.s32 0, %v309
      %v311 = vrot.slane %v306, %v310
      %v312 = vlaneseq
      %v313 = vshrl.u32 %v312, 7
      %v314 = vsub.s32 1, %v313
      %v315 = vrot.slane %v306, %v314
      %v322 = vunpack.c.l.b16 %v302
      %v323 = vunpack.c.h.b16 %v302
      %v324 = vunpack.c.l.b16 %v303
      %v325 = vunpack.c.h.b16 %v303
      %v326 = vunpack.c.l.b16 %v304
      %v327 = vunpack.c.h.b16 %v304
      %v328 = vunpack.c.l.b16 %v305
      %v329 = vunpack.c.h.b16 %v305
      %v330 = vpack.c.b16 %v324, %v322
      %v331 = vpack.c.b16 %v325, %v323
      %v332 = vpack.c.b16 %v328, %v326
      %v333 = vpack.c.b16 %v329, %v327
      %vm338 = vcmask 261120
      %v340 = vsel %vm338, %v294, 0
      %v343 = vsel %vm338, %v295, 0
      %v346 = vsel %vm338, %v296, 0
      %v349 = vsel %vm338, %v297, 0
      %v352 = vsel %vm338, %v298, 0
      %v355 = vsel %vm338, %v299, 0
      %v358 = vsel %vm338, %v300, 0
      %v361 = vsel %vm338, %v301, 0
      %363 = vmatprep.subr.bf16.mxu0 0
      %364 = vmatpush1.bf16.msra.mxu0 0
      %365 = vmatprep.subr.bf16.mxu0 0
      %366 = vmatpush1.bf16.msra.mxu0 0
      %367 = vmatprep.subr.bf16.mxu0 0
      %368 = vmatpush1.bf16.msra.mxu0 0
      %369 = vmatprep.subr.bf16.mxu0 0
      %370 = vmatpush1.bf16.msra.mxu0 0
      %371 = vmatprep.subr.bf16.mxu0 0
      %372 = vmatpush1.bf16.msra.mxu0 0
      %373 = vmatprep.subr.bf16.mxu0 0
      %374 = vmatpush1.bf16.msra.mxu0 0
      %375 = vmatprep.subr.bf16.mxu0 %v333
      %376 = vmatpush1.bf16.msra.mxu0 %v332
      %377 = vmatprep.subr.bf16.mxu0 %v331
      %378 = vmatpush1.bf16.msra.mxu0 %v330
      %379 = vmatprep.subr.bf16.mxu0 0
      %380 = vmatpush2.bf16.msra.mxu0 0
      %381 = vmatprep.subr.bf16.mxu0 0
      %382 = vmatpush2.bf16.msra.mxu0 0
      %383 = vmatprep.subr.bf16.mxu0 0
      %384 = vmatpush2.bf16.msra.mxu0 0
      %385 = vmatprep.subr.bf16.mxu0 0
      %386 = vmatpush2.bf16.msra.mxu0 0
      %387 = vmatprep.subr.bf16.mxu0 0
      %388 = vmatpush2.bf16.msra.mxu0 0
      %389 = vmatprep.subr.bf16.mxu0 0
      %390 = vmatpush2.bf16.msra.mxu0 0
      %391 = vmatprep.subr.bf16.mxu0 0
      %392 = vmatpush2.bf16.msra.mxu0 0
      %393 = vmatprep.subr.bf16.mxu0 0
      %394 = vmatpush2.bf16.msra.mxu0 0
      %395 = vmatprep.mubr.bf16.mxu0 0
      %396 = vmatmul.mubr.bf16.gmra.mxu0 %v340
      %v397 = vpop.f32.mrf.mxu0
      %v398 = vadd.f32 %v311, %v397
      %v399 = vpop.f32.mrf.mxu0
      %v400 = vadd.f32 %v315, %v399
      %v401 = vpop.f32.mrf.mxu0
      %v402 = vadd.f32 %v311, %v401
      %v403 = vpop.f32.mrf.mxu0
      %v404 = vadd.f32 %v315, %v403
      %405 = vmatprep.mubr.bf16.mxu0 0
      %406 = vmatmul.mubr.bf16.gmra.mxu0 %v343
      %v407 = vpop.f32.mrf.mxu0
      %v408 = vadd.f32 %v311, %v407
      %v409 = vpop.f32.mrf.mxu0
      %v410 = vadd.f32 %v315, %v409
      %v411 = vpop.f32.mrf.mxu0
      %v412 = vadd.f32 %v311, %v411
      %v413 = vpop.f32.mrf.mxu0
      %v414 = vadd.f32 %v315, %v413
      %415 = vmatprep.mubr.bf16.mxu0 0
      %416 = vmatmul.mubr.bf16.gmra.mxu0 %v346
      %v417 = vpop.f32.mrf.mxu0
      %v418 = vadd.f32 %v311, %v417
      %v419 = vpop.f32.mrf.mxu0
      %v420 = vadd.f32 %v315, %v419
      %v421 = vpop.f32.mrf.mxu0
      %v422 = vadd.f32 %v311, %v421
      %v423 = vpop.f32.mrf.mxu0
      %v424 = vadd.f32 %v315, %v423
      %425 = vmatprep.mubr.bf16.mxu0 0
      %426 = vmatmul.mubr.bf16.gmra.mxu0 %v349
      %v427 = vpop.f32.mrf.mxu0
      %v428 = vadd.f32 %v311, %v427
      %v429 = vpop.f32.mrf.mxu0
      %v430 = vadd.f32 %v315, %v429
      %v431 = vpop.f32.mrf.mxu0
      %v432 = vadd.f32 %v311, %v431
      %v433 = vpop.f32.mrf.mxu0
      %v434 = vadd.f32 %v315, %v433
      %435 = vmatprep.mubr.bf16.mxu0 0
      %436 = vmatmul.mubr.bf16.gmra.mxu0 %v352
      %v437 = vpop.f32.mrf.mxu0
      %v438 = vadd.f32 %v311, %v437
      %v439 = vpop.f32.mrf.mxu0
      %v440 = vadd.f32 %v315, %v439
      %v441 = vpop.f32.mrf.mxu0
      %v442 = vadd.f32 %v311, %v441
      %v443 = vpop.f32.mrf.mxu0
      %v444 = vadd.f32 %v315, %v443
      %445 = vmatprep.mubr.bf16.mxu0 0
      %446 = vmatmul.mubr.bf16.gmra.mxu0 %v355
      %v447 = vpop.f32.mrf.mxu0
      %v448 = vadd.f32 %v311, %v447
      %v449 = vpop.f32.mrf.mxu0
      %v450 = vadd.f32 %v315, %v449
      %v451 = vpop.f32.mrf.mxu0
      %v452 = vadd.f32 %v311, %v451
      %v453 = vpop.f32.mrf.mxu0
      %v454 = vadd.f32 %v315, %v453
      %455 = vmatprep.mubr.bf16.mxu0 0
      %456 = vmatmul.mubr.bf16.gmra.mxu0 %v358
      %v457 = vpop.f32.mrf.mxu0
      %v458 = vadd.f32 %v311, %v457
      %v459 = vpop.f32.mrf.mxu0
      %v460 = vadd.f32 %v315, %v459
      %v461 = vpop.f32.mrf.mxu0
      %v462 = vadd.f32 %v311, %v461
      %v463 = vpop.f32.mrf.mxu0
      %v464 = vadd.f32 %v315, %v463
      %465 = vmatprep.mubr.bf16.mxu0 0
      %466 = vmatmul.mubr.bf16.gmra.mxu0 %v361
      %v467 = vpop.f32.mrf.mxu0
      %v468 = vadd.f32 %v311, %v467
      %v469 = vpop.f32.mrf.mxu0
      %v470 = vadd.f32 %v315, %v469
      %v471 = vpop.f32.mrf.mxu0
      %v472 = vadd.f32 %v311, %v471
      %v473 = vpop.f32.mrf.mxu0
      %v474 = vadd.f32 %v315, %v473
      %475 = vdwg.mxu0
      %v476 = vmax.f32 %v398, 0.0
      %v477 = vmax.f32 %v400, 0.0
      %v478 = vmax.f32 %v402, 0.0
      %v479 = vmax.f32 %v404, 0.0
      %v480 = vmax.f32 %v408, 0.0
      %v481 = vmax.f32 %v410, 0.0
      %v482 = vmax.f32 %v412, 0.0
      %v483 = vmax.f32 %v414, 0.0
      %v484 = vmax.f32 %v418, 0.0
      %v485 = vmax.f32 %v420, 0.0
      %v486 = vmax.f32 %v422, 0.0
      %v487 = vmax.f32 %v424, 0.0
      %v488 = vmax.f32 %v428, 0.0
      %v489 = vmax.f32 %v430, 0.0
      %v490 = vmax.f32 %v432, 0.0
      %v491 = vmax.f32 %v434, 0.0
      %v492 = vmax.f32 %v438, 0.0
      %v493 = vmax.f32 %v440, 0.0
      %v494 = vmax.f32 %v442, 0.0
      %v495 = vmax.f32 %v444, 0.0
      %v496 = vmax.f32 %v448, 0.0
      %v497 = vmax.f32 %v450, 0.0
      %v498 = vmax.f32 %v452, 0.0
      %v499 = vmax.f32 %v454, 0.0
      %v500 = vmax.f32 %v458, 0.0
      %v501 = vmax.f32 %v460, 0.0
      %v502 = vmax.f32 %v462, 0.0
      %v503 = vmax.f32 %v464, 0.0
      %v504 = vmax.f32 %v468, 0.0
      %v505 = vmax.f32 %v470, 0.0
      %v506 = vmax.f32 %v472, 0.0
      %v507 = vmax.f32 %v474, 0.0
      %v508 = vpack.c.bf16 %v478, %v476
      %v509 = vpack.c.bf16 %v479, %v477
      %v510 = vpack.c.bf16 %v482, %v480
      %v511 = vpack.c.bf16 %v483, %v481
      %v512 = vpack.c.bf16 %v486, %v484
      %v513 = vpack.c.bf16 %v487, %v485
      %v514 = vpack.c.bf16 %v490, %v488
      %v515 = vpack.c.bf16 %v491, %v489
      %v516 = vpack.c.bf16 %v494, %v492
      %v517 = vpack.c.bf16 %v495, %v493
      %v518 = vpack.c.bf16 %v498, %v496
      %v519 = vpack.c.bf16 %v499, %v497
      %v520 = vpack.c.bf16 %v502, %v500
      %v521 = vpack.c.bf16 %v503, %v501
      %v522 = vpack.c.bf16 %v506, %v504
      %v523 = vpack.c.bf16 %v507, %v505
      %v524 = vld [vmem:[%s3] sm:$0xff]
      %v525 = vld [vmem:[%s3 + $0x8] sm:$0xff]
      %v526 = vld [vmem:[%s3 + $0x10] sm:$0xff]
      %v527 = vld [vmem:[%s3 + $0x18] sm:$0xff]
      %v528 = vld [vmem:[%s3 + $0x20] sm:$0xff]
      %v529 = vld [vmem:[%s3 + $0x28] sm:$0xff]
      %v530 = vld [vmem:[%s3 + $0x30] sm:$0xff]
      %v531 = vld [vmem:[%s3 + $0x38] sm:$0xff]
      %v532 = vld [vmem:[%s3 + $0x40] sm:$0xff]
      %v533 = vld [vmem:[%s3 + $0x48] sm:$0xff]
      %v534 = vld [vmem:[%s3 + $0x50] sm:$0xff]
      %v535 = vld [vmem:[%s3 + $0x58] sm:$0xff]
      %v536 = vld [vmem:[%s3 + $0x60] sm:$0xff]
      %v537 = vld [vmem:[%s3 + $0x68] sm:$0xff]
      %v538 = vld [vmem:[%s3 + $0x70] sm:$0xff]
      %v539 = vld [vmem:[%s3 + $0x78] sm:$0xff]
      %v540 = vld [vmem:[%s3 + $0x80] sm:$0xff]
      %v541 = vld [vmem:[%s3 + $0x88] sm:$0xff]
      %v542 = vld [vmem:[%s3 + $0x90] sm:$0xff]
      %v543 = vld [vmem:[%s3 + $0x98] sm:$0xff]
      %v544 = vld [vmem:[%s3 + $0xa0] sm:$0xff]
      %v545 = vld [vmem:[%s3 + $0xa8] sm:$0xff]
      %v546 = vld [vmem:[%s3 + $0xb0] sm:$0xff]
      %v547 = vld [vmem:[%s3 + $0xb8] sm:$0xff]
      %v548 = vld [vmem:[%s3 + $0xc0] sm:$0xff]
      %v549 = vld [vmem:[%s3 + $0xc8] sm:$0xff]
      %v550 = vld [vmem:[%s3 + $0xd0] sm:$0xff]
      %v551 = vld [vmem:[%s3 + $0xd8] sm:$0xff]
      %v552 = vld [vmem:[%s3 + $0xe0] sm:$0xff]
      %v553 = vld [vmem:[%s3 + $0xe8] sm:$0xff]
      %v554 = vld [vmem:[%s3 + $0xf0] sm:$0xff]
      %v555 = vld [vmem:[%s3 + $0xf8] sm:$0xff]
      %s556 = scalar_lea.vmem %s5, 1
      %v557 = vld [vmem:[%s556] ss:$4 sm:$0x3]
      %v559 = vlaneseq
      %v560 = vshrl.u32 %v559, 7
      %v561 = vsub.s32 0, %v560
      %v562 = vrot.slane %v557, %v561
      %v563 = vlaneseq
      %v564 = vshrl.u32 %v563, 7
      %v565 = vsub.s32 1, %v564
      %v566 = vrot.slane %v557, %v565
      %v601 = vunpack.c.l.b16 %v524
      %v602 = vunpack.c.h.b16 %v524
      %v603 = vunpack.c.l.b16 %v525
      %v604 = vunpack.c.h.b16 %v525
      %v605 = vunpack.c.l.b16 %v526
      %v606 = vunpack.c.h.b16 %v526
      %v607 = vunpack.c.l.b16 %v527
      %v608 = vunpack.c.h.b16 %v527
      %v609 = vunpack.c.l.b16 %v528
      %v610 = vunpack.c.h.b16 %v528
      %v611 = vunpack.c.l.b16 %v529
      %v612 = vunpack.c.h.b16 %v529
      %v613 = vunpack.c.l.b16 %v530
      %v614 = vunpack.c.h.b16 %v530
      %v615 = vunpack.c.l.b16 %v531
      %v616 = vunpack.c.h.b16 %v531
      %v617 = vunpack.c.l.b16 %v532
      %v618 = vunpack.c.h.b16 %v532
      %v619 = vunpack.c.l.b16 %v533
      %v620 = vunpack.c.h.b16 %v533
      %v621 = vunpack.c.l.b16 %v534
      %v622 = vunpack.c.h.b16 %v534
      %v623 = vunpack.c.l.b16 %v535
      %v624 = vunpack.c.h.b16 %v535
      %v625 = vunpack.c.l.b16 %v536
      %v626 = vunpack.c.h.b16 %v536
      %v627 = vunpack.c.l.b16 %v537
      %v628 = vunpack.c.h.b16 %v537
      %v629 = vunpack.c.l.b16 %v538
      %v630 = vunpack.c.h.b16 %v538
      %v631 = vunpack.c.l.b16 %v539
      %v632 = vunpack.c.h.b16 %v539
      %v633 = vunpack.c.l.b16 %v540
      %v634 = vunpack.c.h.b16 %v540
      %v635 = vunpack.c.l.b16 %v541
      %v636 = vunpack.c.h.b16 %v541
      %v637 = vunpack.c.l.b16 %v542
      %v638 = vunpack.c.h.b16 %v542
      %v639 = vunpack.c.l.b16 %v543
      %v640 = vunpack.c.h.b16 %v543
      %v641 = vunpack.c.l.b16 %v544
      %v642 = vunpack.c.h.b16 %v544
      %v643 = vunpack.c.l.b16 %v545
      %v644 = vunpack.c.h.b16 %v545
      %v645 = vunpack.c.l.b16 %v546
      %v646 = vunpack.c.h.b16 %v546
      %v647 = vunpack.c.l.b16 %v547
      %v648 = vunpack.c.h.b16 %v547
      %v649 = vunpack.c.l.b16 %v548
      %v650 = vunpack.c.h.b16 %v548
      %v651 = vunpack.c.l.b16 %v549
      %v652 = vunpack.c.h.b16 %v549
      %v653 = vunpack.c.l.b16 %v550
      %v654 = vunpack.c.h.b16 %v550
      %v655 = vunpack.c.l.b16 %v551
      %v656 = vunpack.c.h.b16 %v551
      %v657 = vunpack.c.l.b16 %v552
      %v658 = vunpack.c.h.b16 %v552
      %v659 = vunpack.c.l.b16 %v553
      %v660 = vunpack.c.h.b16 %v553
      %v661 = vunpack.c.l.b16 %v554
      %v662 = vunpack.c.h.b16 %v554
      %v663 = vunpack.c.l.b16 %v555
      %v664 = vunpack.c.h.b16 %v555
      %v665 = vpack.c.b16 %v603, %v601
      %v666 = vpack.c.b16 %v604, %v602
      %v667 = vpack.c.b16 %v607, %v605
      %v668 = vpack.c.b16 %v608, %v606
      %v669 = vpack.c.b16 %v611, %v609
      %v670 = vpack.c.b16 %v612, %v610
      %v671 = vpack.c.b16 %v615, %v613
      %v672 = vpack.c.b16 %v616, %v614
      %v673 = vpack.c.b16 %v619, %v617
      %v674 = vpack.c.b16 %v620, %v618
      %v675 = vpack.c.b16 %v623, %v621
      %v676 = vpack.c.b16 %v624, %v622
      %v677 = vpack.c.b16 %v627, %v625
      %v678 = vpack.c.b16 %v628, %v626
      %v679 = vpack.c.b16 %v631, %v629
      %v680 = vpack.c.b16 %v632, %v630
      %v681 = vpack.c.b16 %v635, %v633
      %v682 = vpack.c.b16 %v636, %v634
      %v683 = vpack.c.b16 %v639, %v637
      %v684 = vpack.c.b16 %v640, %v638
      %v685 = vpack.c.b16 %v643, %v641
      %v686 = vpack.c.b16 %v644, %v642
      %v687 = vpack.c.b16 %v647, %v645
      %v688 = vpack.c.b16 %v648, %v646
      %v689 = vpack.c.b16 %v651, %v649
      %v690 = vpack.c.b16 %v652, %v650
      %v691 = vpack.c.b16 %v655, %v653
      %v692 = vpack.c.b16 %v656, %v654
      %v693 = vpack.c.b16 %v659, %v657
      %v694 = vpack.c.b16 %v660, %v658
      %v695 = vpack.c.b16 %v663, %v661
      %v696 = vpack.c.b16 %v664, %v662
      %729 = vmatprep.subr.bf16.mxu0 %v680
      %730 = vmatpush1.bf16.msra.mxu0 %v679
      %731 = vmatprep.subr.bf16.mxu0 %v678
      %732 = vmatpush1.bf16.msra.mxu0 %v677
      %733 = vmatprep.subr.bf16.mxu0 %v676
      %734 = vmatpush1.bf16.msra.mxu0 %v675
      %735 = vmatprep.subr.bf16.mxu0 %v674
      %736 = vmatpush1.bf16.msra.mxu0 %v673
      %737 = vmatprep.subr.bf16.mxu0 %v672
      %738 = vmatpush1.bf16.msra.mxu0 %v671
      %739 = vmatprep.subr.bf16.mxu0 %v670
      %740 = vmatpush1.bf16.msra.mxu0 %v669
      %741 = vmatprep.subr.bf16.mxu0 %v668
      %742 = vmatpush1.bf16.msra.mxu0 %v667
      %743 = vmatprep.subr.bf16.mxu0 %v666
      %744 = vmatpush1.bf16.msra.mxu0 %v665
      %745 = vmatprep.subr.bf16.mxu0 %v696
      %746 = vmatpush2.bf16.msra.mxu0 %v695
      %747 = vmatprep.subr.bf16.mxu0 %v694
      %748 = vmatpush2.bf16.msra.mxu0 %v693
      %749 = vmatprep.subr.bf16.mxu0 %v692
      %750 = vmatpush2.bf16.msra.mxu0 %v691
      %751 = vmatprep.subr.bf16.mxu0 %v690
      %752 = vmatpush2.bf16.msra.mxu0 %v689
      %753 = vmatprep.subr.bf16.mxu0 %v688
      %754 = vmatpush2.bf16.msra.mxu0 %v687
      %755 = vmatprep.subr.bf16.mxu0 %v686
      %756 = vmatpush2.bf16.msra.mxu0 %v685
      %757 = vmatprep.subr.bf16.mxu0 %v684
      %758 = vmatpush2.bf16.msra.mxu0 %v683
      %759 = vmatprep.subr.bf16.mxu0 %v682
      %760 = vmatpush2.bf16.msra.mxu0 %v681
      %761 = vmatprep.mubr.bf16.mxu0 %v509
      %762 = vmatmul.mubr.bf16.gmra.mxu0 %v508
      %v763 = vpop.f32.mrf.mxu0
      %v764 = vadd.f32 %v562, %v763
      %v765 = vpop.f32.mrf.mxu0
      %v766 = vadd.f32 %v566, %v765
      %v767 = vpop.f32.mrf.mxu0
      %v768 = vadd.f32 %v562, %v767
      %v769 = vpop.f32.mrf.mxu0
      %v770 = vadd.f32 %v566, %v769
      %771 = vmatprep.mubr.bf16.mxu0 %v511
      %772 = vmatmul.mubr.bf16.gmra.mxu0 %v510
      %v773 = vpop.f32.mrf.mxu0
      %v774 = vadd.f32 %v562, %v773
      %v775 = vpop.f32.mrf.mxu0
      %v776 = vadd.f32 %v566, %v775
      %v777 = vpop.f32.mrf.mxu0
      %v778 = vadd.f32 %v562, %v777
      %v779 = vpop.f32.mrf.mxu0
      %v780 = vadd.f32 %v566, %v779
      %781 = vmatprep.mubr.bf16.mxu0 %v513
      %782 = vmatmul.mubr.bf16.gmra.mxu0 %v512
      %v783 = vpop.f32.mrf.mxu0
      %v784 = vadd.f32 %v562, %v783
      %v785 = vpop.f32.mrf.mxu0
      %v786 = vadd.f32 %v566, %v785
      %v787 = vpop.f32.mrf.mxu0
      %v788 = vadd.f32 %v562, %v787
      %v789 = vpop.f32.mrf.mxu0
      %v790 = vadd.f32 %v566, %v789
      %791 = vmatprep.mubr.bf16.mxu0 %v515
      %792 = vmatmul.mubr.bf16.gmra.mxu0 %v514
      %v793 = vpop.f32.mrf.mxu0
      %v794 = vadd.f32 %v562, %v793
      %v795 = vpop.f32.mrf.mxu0
      %v796 = vadd.f32 %v566, %v795
      %v797 = vpop.f32.mrf.mxu0
      %v798 = vadd.f32 %v562, %v797
      %v799 = vpop.f32.mrf.mxu0
      %v800 = vadd.f32 %v566, %v799
      %801 = vmatprep.mubr.bf16.mxu0 %v517
      %802 = vmatmul.mubr.bf16.gmra.mxu0 %v516
      %v803 = vpop.f32.mrf.mxu0
      %v804 = vadd.f32 %v562, %v803
      %v805 = vpop.f32.mrf.mxu0
      %v806 = vadd.f32 %v566, %v805
      %v807 = vpop.f32.mrf.mxu0
      %v808 = vadd.f32 %v562, %v807
      %v809 = vpop.f32.mrf.mxu0
      %v810 = vadd.f32 %v566, %v809
      %811 = vmatprep.mubr.bf16.mxu0 %v519
      %812 = vmatmul.mubr.bf16.gmra.mxu0 %v518
      %v813 = vpop.f32.mrf.mxu0
      %v814 = vadd.f32 %v562, %v813
      %v815 = vpop.f32.mrf.mxu0
      %v816 = vadd.f32 %v566, %v815
      %v817 = vpop.f32.mrf.mxu0
      %v818 = vadd.f32 %v562, %v817
      %v819 = vpop.f32.mrf.mxu0
      %v820 = vadd.f32 %v566, %v819
      %821 = vmatprep.mubr.bf16.mxu0 %v521
      %822 = vmatmul.mubr.bf16.gmra.mxu0 %v520
      %v823 = vpop.f32.mrf.mxu0
      %v824 = vadd.f32 %v562, %v823
      %v825 = vpop.f32.mrf.mxu0
      %v826 = vadd.f32 %v566, %v825
      %v827 = vpop.f32.mrf.mxu0
      %v828 = vadd.f32 %v562, %v827
      %v829 = vpop.f32.mrf.mxu0
      %v830 = vadd.f32 %v566, %v829
      %831 = vmatprep.mubr.bf16.mxu0 %v523
      %832 = vmatmul.mubr.bf16.gmra.mxu0 %v522
      %v833 = vpop.f32.mrf.mxu0
      %v834 = vadd.f32 %v562, %v833
      %v835 = vpop.f32.mrf.mxu0
      %v836 = vadd.f32 %v566, %v835
      %v837 = vpop.f32.mrf.mxu0
      %v838 = vadd.f32 %v562, %v837
      %v839 = vpop.f32.mrf.mxu0
      %v840 = vadd.f32 %v566, %v839
      %841 = vdwg.mxu0
      %v842 = vmax.f32 %v764, 0.0
      %v843 = vmax.f32 %v766, 0.0
      %v844 = vmax.f32 %v768, 0.0
      %v845 = vmax.f32 %v770, 0.0
      %v846 = vmax.f32 %v774, 0.0
      %v847 = vmax.f32 %v776, 0.0
      %v848 = vmax.f32 %v778, 0.0
      %v849 = vmax.f32 %v780, 0.0
      %v850 = vmax.f32 %v784, 0.0
      %v851 = vmax.f32 %v786, 0.0
      %v852 = vmax.f32 %v788, 0.0
      %v853 = vmax.f32 %v790, 0.0
      %v854 = vmax.f32 %v794, 0.0
      %v855 = vmax.f32 %v796, 0.0
      %v856 = vmax.f32 %v798, 0.0
      %v857 = vmax.f32 %v800, 0.0
      %v858 = vmax.f32 %v804, 0.0
      %v859 = vmax.f32 %v806, 0.0
      %v860 = vmax.f32 %v808, 0.0
      %v861 = vmax.f32 %v810, 0.0
      %v862 = vmax.f32 %v814, 0.0
      %v863 = vmax.f32 %v816, 0.0
      %v864 = vmax.f32 %v818, 0.0
      %v865 = vmax.f32 %v820, 0.0
      %v866 = vmax.f32 %v824, 0.0
      %v867 = vmax.f32 %v826, 0.0
      %v868 = vmax.f32 %v828, 0.0
      %v869 = vmax.f32 %v830, 0.0
      %v870 = vmax.f32 %v834, 0.0
      %v871 = vmax.f32 %v836, 0.0
      %v872 = vmax.f32 %v838, 0.0
      %v873 = vmax.f32 %v840, 0.0
      %v874 = vpack.c.bf16 %v844, %v842
      %v875 = vpack.c.bf16 %v845, %v843
      %v876 = vpack.c.bf16 %v848, %v846
      %v877 = vpack.c.bf16 %v849, %v847
      %v878 = vpack.c.bf16 %v852, %v850
      %v879 = vpack.c.bf16 %v853, %v851
      %v880 = vpack.c.bf16 %v856, %v854
      %v881 = vpack.c.bf16 %v857, %v855
      %v882 = vpack.c.bf16 %v860, %v858
      %v883 = vpack.c.bf16 %v861, %v859
      %v884 = vpack.c.bf16 %v864, %v862
      %v885 = vpack.c.bf16 %v865, %v863
      %v886 = vpack.c.bf16 %v868, %v866
      %v887 = vpack.c.bf16 %v869, %v867
      %v888 = vpack.c.bf16 %v872, %v870
      %v889 = vpack.c.bf16 %v873, %v871
      %v890 = vld [vmem:[%s4] sm:$0xf]
      %v891 = vld [vmem:[%s4 + $0x4] sm:$0xf]
      %v892 = vld [vmem:[%s4 + $0x8] sm:$0xf]
      %v893 = vld [vmem:[%s4 + $0xc] sm:$0xf]
      %v894 = vld [vmem:[%s4 + $0x10] sm:$0xf]
      %v895 = vld [vmem:[%s4 + $0x14] sm:$0xf]
      %v896 = vld [vmem:[%s4 + $0x18] sm:$0xf]
      %v897 = vld [vmem:[%s4 + $0x1c] sm:$0xf]
      %v898 = vld [vmem:[%s4 + $0x20] sm:$0xf]
      %v899 = vld [vmem:[%s4 + $0x24] sm:$0xf]
      %v900 = vld [vmem:[%s4 + $0x28] sm:$0xf]
      %v901 = vld [vmem:[%s4 + $0x2c] sm:$0xf]
      %v902 = vld [vmem:[%s4 + $0x30] sm:$0xf]
      %v903 = vld [vmem:[%s4 + $0x34] sm:$0xf]
      %v904 = vld [vmem:[%s4 + $0x38] sm:$0xf]
      %v905 = vld [vmem:[%s4 + $0x3c] sm:$0xf]
      %v906 = vld [vmem:[%s4 + $0x40] sm:$0xf]
      %v907 = vld [vmem:[%s4 + $0x44] sm:$0xf]
      %v908 = vld [vmem:[%s4 + $0x48] sm:$0xf]
      %v909 = vld [vmem:[%s4 + $0x4c] sm:$0xf]
      %v910 = vld [vmem:[%s4 + $0x50] sm:$0xf]
      %v911 = vld [vmem:[%s4 + $0x54] sm:$0xf]
      %v912 = vld [vmem:[%s4 + $0x58] sm:$0xf]
      %v913 = vld [vmem:[%s4 + $0x5c] sm:$0xf]
      %v914 = vld [vmem:[%s4 + $0x60] sm:$0xf]
      %v915 = vld [vmem:[%s4 + $0x64] sm:$0xf]
      %v916 = vld [vmem:[%s4 + $0x68] sm:$0xf]
      %v917 = vld [vmem:[%s4 + $0x6c] sm:$0xf]
      %v918 = vld [vmem:[%s4 + $0x70] sm:$0xf]
      %v919 = vld [vmem:[%s4 + $0x74] sm:$0xf]
      %v920 = vld [vmem:[%s4 + $0x78] sm:$0xf]
      %v921 = vld [vmem:[%s4 + $0x7c] sm:$0xf]
      %v922 = vld [vmem:[%s5 + $0x2] sm:$0x1]
      %v923 = vlaneseq
      %v924 = vshrl.u32 %v923, 7
      %v925 = vsub.s32 0, %v924
      %v926 = vrot.slane %v922, %v925
      %v959 = vunpack.c.l.b16 %v890
      %v960 = vunpack.c.l.b16 %v891
      %v961 = vunpack.c.l.b16 %v892
      %v962 = vunpack.c.l.b16 %v893
      %v963 = vunpack.c.l.b16 %v894
      %v964 = vunpack.c.l.b16 %v895
      %v965 = vunpack.c.l.b16 %v896
      %v966 = vunpack.c.l.b16 %v897
      %v967 = vunpack.c.l.b16 %v898
      %v968 = vunpack.c.l.b16 %v899
      %v969 = vunpack.c.l.b16 %v900
      %v970 = vunpack.c.l.b16 %v901
      %v971 = vunpack.c.l.b16 %v902
      %v972 = vunpack.c.l.b16 %v903
      %v973 = vunpack.c.l.b16 %v904
      %v974 = vunpack.c.l.b16 %v905
      %v975 = vunpack.c.l.b16 %v906
      %v976 = vunpack.c.l.b16 %v907
      %v977 = vunpack.c.l.b16 %v908
      %v978 = vunpack.c.l.b16 %v909
      %v979 = vunpack.c.l.b16 %v910
      %v980 = vunpack.c.l.b16 %v911
      %v981 = vunpack.c.l.b16 %v912
      %v982 = vunpack.c.l.b16 %v913
      %v983 = vunpack.c.l.b16 %v914
      %v984 = vunpack.c.l.b16 %v915
      %v985 = vunpack.c.l.b16 %v916
      %v986 = vunpack.c.l.b16 %v917
      %v987 = vunpack.c.l.b16 %v918
      %v988 = vunpack.c.l.b16 %v919
      %v989 = vunpack.c.l.b16 %v920
      %v990 = vunpack.c.l.b16 %v921
      %v991 = vpack.c.b16 %v960, %v959
      %v992 = vpack.c.b16 %v962, %v961
      %v993 = vpack.c.b16 %v964, %v963
      %v994 = vpack.c.b16 %v966, %v965
      %v995 = vpack.c.b16 %v968, %v967
      %v996 = vpack.c.b16 %v970, %v969
      %v997 = vpack.c.b16 %v972, %v971
      %v998 = vpack.c.b16 %v974, %v973
      %v999 = vpack.c.b16 %v976, %v975
      %v1000 = vpack.c.b16 %v978, %v977
      %v1001 = vpack.c.b16 %v980, %v979
      %v1002 = vpack.c.b16 %v982, %v981
      %v1003 = vpack.c.b16 %v984, %v983
      %v1004 = vpack.c.b16 %v986, %v985
      %v1005 = vpack.c.b16 %v988, %v987
      %v1006 = vpack.c.b16 %v990, %v989
      %1023 = vmatprep.subr.bf16.mxu0 0
      %1024 = vmatpush1.bf16.msra.mxu0 %v998
      %1025 = vmatprep.subr.bf16.mxu0 0
      %1026 = vmatpush1.bf16.msra.mxu0 %v997
      %1027 = vmatprep.subr.bf16.mxu0 0
      %1028 = vmatpush1.bf16.msra.mxu0 %v996
      %1029 = vmatprep.subr.bf16.mxu0 0
      %1030 = vmatpush1.bf16.msra.mxu0 %v995
      %1031 = vmatprep.subr.bf16.mxu0 0
      %1032 = vmatpush1.bf16.msra.mxu0 %v994
      %1033 = vmatprep.subr.bf16.mxu0 0
      %1034 = vmatpush1.bf16.msra.mxu0 %v993
      %1035 = vmatprep.subr.bf16.mxu0 0
      %1036 = vmatpush1.bf16.msra.mxu0 %v992
      %1037 = vmatprep.subr.bf16.mxu0 0
      %1038 = vmatpush1.bf16.msra.mxu0 %v991
      %1039 = vmatprep.subr.bf16.mxu0 0
      %1040 = vmatpush2.bf16.msra.mxu0 %v1006
      %1041 = vmatprep.subr.bf16.mxu0 0
      %1042 = vmatpush2.bf16.msra.mxu0 %v1005
      %1043 = vmatprep.subr.bf16.mxu0 0
      %1044 = vmatpush2.bf16.msra.mxu0 %v1004
      %1045 = vmatprep.subr.bf16.mxu0 0
      %1046 = vmatpush2.bf16.msra.mxu0 %v1003
      %1047 = vmatprep.subr.bf16.mxu0 0
      %1048 = vmatpush2.bf16.msra.mxu0 %v1002
      %1049 = vmatprep.subr.bf16.mxu0 0
      %1050 = vmatpush2.bf16.msra.mxu0 %v1001
      %1051 = vmatprep.subr.bf16.mxu0 0
      %1052 = vmatpush2.bf16.msra.mxu0 %v1000
      %1053 = vmatprep.subr.bf16.mxu0 0
      %1054 = vmatpush2.bf16.msra.mxu0 %v999
      %1055 = vmatprep.mubr.bf16.mxu0 %v875
      %1056 = vmatmul.mubr.bf16.gmra.mxu0 %v874
      %v1057 = vpop.f32.mrf.mxu0
      %v1058 = vadd.f32 %v926, %v1057
      %v1059 = vpop.f32.mrf.mxu0
      %v1060 = vpop.f32.mrf.mxu0
      %v1061 = vadd.f32 %v926, %v1060
      %v1062 = vpop.f32.mrf.mxu0
      %1063 = vmatprep.mubr.bf16.mxu0 %v877
      %1064 = vmatmul.mubr.bf16.gmra.mxu0 %v876
      %v1065 = vpop.f32.mrf.mxu0
      %v1066 = vadd.f32 %v926, %v1065
      %v1067 = vpop.f32.mrf.mxu0
      %v1068 = vpop.f32.mrf.mxu0
      %v1069 = vadd.f32 %v926, %v1068
      %v1070 = vpop.f32.mrf.mxu0
      %1071 = vmatprep.mubr.bf16.mxu0 %v879
      %1072 = vmatmul.mubr.bf16.gmra.mxu0 %v878
      %v1073 = vpop.f32.mrf.mxu0
      %v1074 = vadd.f32 %v926, %v1073
      %v1075 = vpop.f32.mrf.mxu0
      %v1076 = vpop.f32.mrf.mxu0
      %v1077 = vadd.f32 %v926, %v1076
      %v1078 = vpop.f32.mrf.mxu0
      %1079 = vmatprep.mubr.bf16.mxu0 %v881
      %1080 = vmatmul.mubr.bf16.gmra.mxu0 %v880
      %v1081 = vpop.f32.mrf.mxu0
      %v1082 = vadd.f32 %v926, %v1081
      %v1083 = vpop.f32.mrf.mxu0
      %v1084 = vpop.f32.mrf.mxu0
      %v1085 = vadd.f32 %v926, %v1084
      %v1086 = vpop.f32.mrf.mxu0
      %1087 = vmatprep.mubr.bf16.mxu0 %v883
      %1088 = vmatmul.mubr.bf16.gmra.mxu0 %v882
      %v1089 = vpop.f32.mrf.mxu0
      %v1090 = vadd.f32 %v926, %v1089
      %v1091 = vpop.f32.mrf.mxu0
      %v1092 = vpop.f32.mrf.mxu0
      %v1093 = vadd.f32 %v926, %v1092
      %v1094 = vpop.f32.mrf.mxu0
      %1095 = vmatprep.mubr.bf16.mxu0 %v885
      %1096 = vmatmul.mubr.bf16.gmra.mxu0 %v884
      %v1097 = vpop.f32.mrf.mxu0
      %v1098 = vadd.f32 %v926, %v1097
      %v1099 = vpop.f32.mrf.mxu0
      %v1100 = vpop.f32.mrf.mxu0
      %v1101 = vadd.f32 %v926, %v1100
      %v1102 = vpop.f32.mrf.mxu0
      %1103 = vmatprep.mubr.bf16.mxu0 %v887
      %1104 = vmatmul.mubr.bf16.gmra.mxu0 %v886
      %v1105 = vpop.f32.mrf.mxu0
      %v1106 = vadd.f32 %v926, %v1105
      %v1107 = vpop.f32.mrf.mxu0
      %v1108 = vpop.f32.mrf.mxu0
      %v1109 = vadd.f32 %v926, %v1108
      %v1110 = vpop.f32.mrf.mxu0
      %1111 = vmatprep.mubr.bf16.mxu0 %v889
      %1112 = vmatmul.mubr.bf16.gmra.mxu0 %v888
      %v1113 = vpop.f32.mrf.mxu0
      %v1114 = vadd.f32 %v926, %v1113
      %v1115 = vpop.f32.mrf.mxu0
      %v1116 = vpop.f32.mrf.mxu0
      %v1117 = vadd.f32 %v926, %v1116
      %v1118 = vpop.f32.mrf.mxu0
      %1119 = vdwg.mxu0
      %v1120 = vlaneseq
      %v1121 = vand.u32 %v1120, 127
      %vm1122 = vcmp.ge.s32.totalorder %v1121, 8
      %vm1123 = vcmp.lt.s32.totalorder %v1121, 19
      %vm1124 = vmand %vm1122, %vm1123
      %v1125 = vsub.f32 0.0, %v1058
      %v1126 = vsub.f32 0.0, %v1061
      %v1127 = vsub.f32 0.0, %v1066
      %v1128 = vsub.f32 0.0, %v1069
      %v1129 = vsub.f32 0.0, %v1074
      %v1130 = vsub.f32 0.0, %v1077
      %v1131 = vsub.f32 0.0, %v1082
      %v1132 = vsub.f32 0.0, %v1085
      %v1133 = vsub.f32 0.0, %v1090
      %v1134 = vsub.f32 0.0, %v1093
      %v1135 = vsub.f32 0.0, %v1098
      %v1136 = vsub.f32 0.0, %v1101
      %v1137 = vsub.f32 0.0, %v1106
      %v1138 = vsub.f32 0.0, %v1109
      %v1139 = vsub.f32 0.0, %v1114
      %v1140 = vsub.f32 0.0, %v1117
      %v1141 = vmul.f32 %v1125, 1.442695
      %v1142 = vpow.pop %v1141
      %v1143 = vmul.f32 %v1126, 1.442695
      %v1144 = vpow.pop %v1143
      %v1145 = vmul.f32 %v1127, 1.442695
      %v1146 = vpow.pop %v1145
      %v1147 = vmul.f32 %v1128, 1.442695
      %v1148 = vpow.pop %v1147
      %v1149 = vmul.f32 %v1129, 1.442695
      %v1150 = vpow.pop %v1149
      %v1151 = vmul.f32 %v1130, 1.442695
      %v1152 = vpow.pop %v1151
      %v1153 = vmul.f32 %v1131, 1.442695
      %v1154 = vpow.pop %v1153
      %v1155 = vmul.f32 %v1132, 1.442695
      %v1156 = vpow.pop %v1155
      %v1157 = vmul.f32 %v1133, 1.442695
      %v1158 = vpow.pop %v1157
      %v1159 = vmul.f32 %v1134, 1.442695
      %v1160 = vpow.pop %v1159
      %v1161 = vmul.f32 %v1135, 1.442695
      %v1162 = vpow.pop %v1161
      %v1163 = vmul.f32 %v1136, 1.442695
      %v1164 = vpow.pop %v1163
      %v1165 = vmul.f32 %v1137, 1.442695
      %v1166 = vpow.pop %v1165
      %v1167 = vmul.f32 %v1138, 1.442695
      %v1168 = vpow.pop %v1167
      %v1169 = vmul.f32 %v1139, 1.442695
      %v1170 = vpow.pop %v1169
      %v1171 = vmul.f32 %v1140, 1.442695
      %v1172 = vpow.pop %v1171
      %v1173 = vadd.f32 %v1142, 1.0
      %v1174 = vadd.f32 %v1144, 1.0
      %v1175 = vadd.f32 %v1146, 1.0
      %v1176 = vadd.f32 %v1148, 1.0
      %v1177 = vadd.f32 %v1150, 1.0
      %v1178 = vadd.f32 %v1152, 1.0
      %v1179 = vadd.f32 %v1154, 1.0
      %v1180 = vadd.f32 %v1156, 1.0
      %v1181 = vadd.f32 %v1158, 1.0
      %v1182 = vadd.f32 %v1160, 1.0
      %v1183 = vadd.f32 %v1162, 1.0
      %v1184 = vadd.f32 %v1164, 1.0
      %v1185 = vadd.f32 %v1166, 1.0
      %v1186 = vadd.f32 %v1168, 1.0
      %v1187 = vadd.f32 %v1170, 1.0
      %v1188 = vadd.f32 %v1172, 1.0
      %v1189 = vrcp.pop %v1173
      %v1190 = vrcp.pop %v1174
      %v1191 = vrcp.pop %v1175
      %v1192 = vrcp.pop %v1176
      %v1193 = vrcp.pop %v1177
      %v1194 = vrcp.pop %v1178
      %v1195 = vrcp.pop %v1179
      %v1196 = vrcp.pop %v1180
      %v1197 = vrcp.pop %v1181
      %v1198 = vrcp.pop %v1182
      %v1199 = vrcp.pop %v1183
      %v1200 = vrcp.pop %v1184
      %v1201 = vrcp.pop %v1185
      %v1202 = vrcp.pop %v1186
      %v1203 = vrcp.pop %v1187
      %v1204 = vrcp.pop %v1188
      %v1205 = vsel %vm1124, %v1189, %v1058
      %v1206 = vsel %vm1124, %v1190, %v1061
      %v1207 = vsel %vm1124, %v1191, %v1066
      %v1208 = vsel %vm1124, %v1192, %v1069
      %v1209 = vsel %vm1124, %v1193, %v1074
      %v1210 = vsel %vm1124, %v1194, %v1077
      %v1211 = vsel %vm1124, %v1195, %v1082
      %v1212 = vsel %vm1124, %v1196, %v1085
      %v1213 = vsel %vm1124, %v1197, %v1090
      %v1214 = vsel %vm1124, %v1198, %v1093
      %v1215 = vsel %vm1124, %v1199, %v1098
      %v1216 = vsel %vm1124, %v1200, %v1101
      %v1217 = vsel %vm1124, %v1201, %v1106
      %v1218 = vsel %vm1124, %v1202, %v1109
      %v1219 = vsel %vm1124, %v1203, %v1114
      %v1220 = vsel %vm1124, %v1204, %v1117
      %v1221 = vld [vmem:[%s269] sm:$0xff]
      %v1222 = vld [vmem:[%s269 + $0x8] sm:$0xff]
      %v1223 = vld [vmem:[%s269 + $0x10] sm:$0xff]
      %v1224 = vld [vmem:[%s269 + $0x18] sm:$0xff]
      %v1225 = vld [vmem:[%s269 + $0x20] sm:$0xff]
      %v1226 = vld [vmem:[%s269 + $0x28] sm:$0xff]
      %v1227 = vld [vmem:[%s269 + $0x30] sm:$0xff]
      %v1228 = vld [vmem:[%s269 + $0x38] sm:$0xff]
      %v1229 = vld [vmem:[%s269 + $0x40] sm:$0xff]
      %v1230 = vld [vmem:[%s269 + $0x48] sm:$0xff]
      %v1231 = vld [vmem:[%s269 + $0x50] sm:$0xff]
      %v1232 = vld [vmem:[%s269 + $0x58] sm:$0xff]
      %v1233 = vld [vmem:[%s269 + $0x60] sm:$0xff]
      %v1234 = vld [vmem:[%s269 + $0x68] sm:$0xff]
      %v1235 = vld [vmem:[%s269 + $0x70] sm:$0xff]
      %v1236 = vld [vmem:[%s269 + $0x78] sm:$0xff]
      %v1237 = vmul.f32 %v1205, %v1221
      %v1238 = vmul.f32 %v1206, %v1222
      %v1239 = vmul.f32 %v1207, %v1223
      %v1240 = vmul.f32 %v1208, %v1224
      %v1241 = vmul.f32 %v1209, %v1225
      %v1242 = vmul.f32 %v1210, %v1226
      %v1243 = vmul.f32 %v1211, %v1227
      %v1244 = vmul.f32 %v1212, %v1228
      %v1245 = vmul.f32 %v1213, %v1229
      %v1246 = vmul.f32 %v1214, %v1230
      %v1247 = vmul.f32 %v1215, %v1231
      %v1248 = vmul.f32 %v1216, %v1232
      %v1249 = vmul.f32 %v1217, %v1233
      %v1250 = vmul.f32 %v1218, %v1234
      %v1251 = vmul.f32 %v1219, %v1235
      %v1252 = vmul.f32 %v1220, %v1236
      %1253 = vst [vmem:[%s275] sm:$0xff] %v1237
      %1254 = vst [vmem:[%s275 + $0x8] sm:$0xff] %v1238
      %1255 = vst [vmem:[%s275 + $0x10] sm:$0xff] %v1239
      %1256 = vst [vmem:[%s275 + $0x18] sm:$0xff] %v1240
      %1257 = vst [vmem:[%s275 + $0x20] sm:$0xff] %v1241
      %1258 = vst [vmem:[%s275 + $0x28] sm:$0xff] %v1242
      %1259 = vst [vmem:[%s275 + $0x30] sm:$0xff] %v1243
      %1260 = vst [vmem:[%s275 + $0x38] sm:$0xff] %v1244
      %1261 = vst [vmem:[%s275 + $0x40] sm:$0xff] %v1245
      %1262 = vst [vmem:[%s275 + $0x48] sm:$0xff] %v1246
      %1263 = vst [vmem:[%s275 + $0x50] sm:$0xff] %v1247
      %1264 = vst [vmem:[%s275 + $0x58] sm:$0xff] %v1248
      %1265 = vst [vmem:[%s275 + $0x60] sm:$0xff] %v1249
      %1266 = vst [vmem:[%s275 + $0x68] sm:$0xff] %v1250
      %1267 = vst [vmem:[%s275 + $0x70] sm:$0xff] %v1251
      %1268 = vst [vmem:[%s275 + $0x78] sm:$0xff] %v1252
      %s1269 = smul.u32 16, %s17
      %p1270 = scmp.lt.s32.totalorder %s1269, 31
      %s1271 = scalar_select %p1270, %s1269, 31
      %s1272 = smul.addr %s1271, 8
      %s1273 = scalar_lea.vmem %s6, %s1272
      // Predicated region
      $region45: #{forward.1} parent=43 // pred_check
        %p1274 = pneg %p171
      $region46: #{forward.1} parent=43 // pred_check_branch
        %1276 = sbr.rel (%p1274) target = $region48
      $region47: #{forward.1} parent=43 // pred_region
        %s1277 = smul.u32 16, %s17
      $region48: #{forward.1} parent=43 // pred_fallthru
        _
    $region44: #{forward.1} parent=5 // pred_fallthru
      _
    %p1278 = scmp.le.s32.totalorder 2, %s12
    // Predicated region
    $region49: #{forward.1} parent=5 // pred_check
      %p1279 = pneg %p1278
    $region50: #{forward.1} parent=5 // pred_check_branch
      %1281 = sbr.rel (%p1279) target = $region52
    $region51: #{forward.1} parent=5 // pred_region
      %s1282 = ssub.s32 %s12, 2
      // Predicated region
      $region53: #{forward.1} parent=51 // pred_check
        %p1283 = pneg %p177
      $region54: #{forward.1} parent=51 // pred_check_branch
        %1285 = sbr.rel (%p1283) target = $region56
      $region55: #{forward.1} parent=51 // pred_region
        %s1286 = smul.u32 16, %s18
        %p1287 = scmp.lt.s32.totalorder %s1286, 31
        %s1288 = scalar_select %p1287, %s1286, 31
        %s1289 = smul.addr %s1288, 8
        %s1290 = scalar_lea.vmem %s6, %s1289
      $region56: #{forward.1} parent=51 // pred_fallthru
        _
    $region52: #{forward.1} parent=5 // pred_fallthru
      _
  $region6: #{forward.1} parent=0 // loop_footer
    %s16 = sadd.s32 1, %s12
  $region7: #{forward.1} parent=0 // loop_footer_branch
    %11 = sbr.rel target = $region3
  $region8: #{forward.1} parent=0 // loop_exit
    _

</llo_original>
